<compile_context>
chip_gen: v5e
topology: v5e:2x2
jax: 0.10.0
libtpu: 0.0.40
codegen_flags: <defaults>
</compile_context>

<pallas_src>
import jax
import jax.numpy as jnp
from jax.experimental import pallas as pl
from jax.experimental.pallas import tpu as pltpu


# ---------------------------------------------------------------------------
# Model hyper-parameters (small, consistent with the module's __init__)
# ---------------------------------------------------------------------------
BATCH = 8
INPUT_DIM = 16
HIDDEN = 32
N_LAYERS = 2
N_HEADS = 4            # mathematically irrelevant: seq_len == 1 => softmax == 1 per head
FFN_DIM = HIDDEN * 4   # 128
N_CLASSES = 4
LN_EPS = 1e-5

LANE = 128             # lane-dense packed width (TPU vreg lane count)

# ---- packed weight-slab row layout (static ints, all offsets multiples of 8) ----
W_IN_OFF = 0                                   # (INPUT_DIM, LANE)
_W_LAYER_BASE = INPUT_DIM                      # per layer: w_attn, w1, w2 (LANE rows each)
W_FC_OFF = INPUT_DIM + N_LAYERS * 3 * LANE     # (LANE, LANE)
W_ROWS = W_FC_OFF + LANE                       # 912 rows x 128 lanes x f32 ~ 456 KiB

# ---- packed bias/affine-slab row layout (one row per vector) ----
B_IN_ROW = 0
_B_LAYER_BASE = 1                              # per layer: b_attn, g1, beta1, b1, b2, g2, beta2
B_FC_ROW = 1 + N_LAYERS * 7
B_ROWS = B_FC_ROW + 1                          # 16 rows x 128 lanes


def _w_base(l):
    return _W_LAYER_BASE + l * 3 * LANE


def _b_base(l):
    return _B_LAYER_BASE + l * 7


# ---------------------------------------------------------------------------
# Kernel
# ---------------------------------------------------------------------------
def emotion_transformer_kernel(x_ref, w_ref, b_ref, out_ref):
    # x_ref:   (BATCH, INPUT_DIM) f32
    # w_ref:   (W_ROWS, LANE)     f32  packed, zero-padded weights (pre-transposed, row-major)
    # b_ref:   (B_ROWS, LANE)     f32  packed, zero-padded biases / LayerNorm affines
    # out_ref: (BATCH, LANE)      f32  lane-dense logits block (real logits in lanes 0..3)
    inv_h = 1.0 / HIDDEN

    def layernorm(y, gamma, beta):
        # Padded lanes of y are exactly zero -> full-lane sums equal sums over HIDDEN features.
        mean = jnp.sum(y, axis=-1, keepdims=True) * inv_h
        ex2 = jnp.sum(y * y, axis=-1, keepdims=True) * inv_h
        var = ex2 - mean * mean                       # biased variance (matches PyTorch)
        inv = jax.lax.rsqrt(var + LN_EPS)
        # gamma/beta are zero in padded lanes -> padded lanes of the result stay zero.
        return (y - mean) * inv * gamma + beta

    # input_proj  (x is (B, 16); w_in is zero-padded to 128 output lanes)
    # NOTE: default MXU precision; pass precision=jax.lax.Precision.HIGHEST to every dot
    # if bit-level parity with PyTorch fp32 is required.
    w_in = w_ref[W_IN_OFF:W_IN_OFF + INPUT_DIM, :]
    h = jnp.dot(x_ref[...], w_in, preferred_element_type=jnp.float32)
    h = h + b_ref[B_IN_ROW:B_IN_ROW + 1, :]

    # TransformerEncoder: N_LAYERS post-norm encoder layers, seq_len == 1.
    for l in range(N_LAYERS):
        wb = _w_base(l)
        bb = _b_base(l)
        w_attn = w_ref[wb:wb + LANE, :]               # (I + Wv@Wo), residual folded in
        w1 = w_ref[wb + LANE:wb + 2 * LANE, :]
        w2 = w_ref[wb + 2 * LANE:wb + 3 * LANE, :]
        b_attn = b_ref[bb + 0:bb + 1, :]
        g1 = b_ref[bb + 1:bb + 2, :]
        beta1 = b_ref[bb + 2:bb + 3, :]
        b1 = b_ref[bb + 3:bb + 4, :]
        b2 = b_ref[bb + 4:bb + 5, :]
        g2 = b_ref[bb + 5:bb + 6, :]
        beta2 = b_ref[bb + 6:bb + 7, :]

        # --- self-attention block (fused + residual folded; dropout = identity) ---
        a = jnp.dot(h, w_attn, preferred_element_type=jnp.float32) + b_attn
        h = layernorm(a, g1, beta1)

        # --- feed-forward block (ReLU); residual cannot fold through the nonlinearity ---
        ff = jnp.dot(h, w1, preferred_element_type=jnp.float32) + b1
        ff = jnp.maximum(ff, 0.0)
        ff = jnp.dot(ff, w2, preferred_element_type=jnp.float32) + b2
        h = layernorm(h + ff, g2, beta2)

    # final dropout is identity at inference; classifier head (lane-dense padded output)
    w_fc = w_ref[W_FC_OFF:W_FC_OFF + LANE, :]
    out_ref[...] = (
        jnp.dot(h, w_fc, preferred_element_type=jnp.float32)
        + b_ref[B_FC_ROW:B_FC_ROW + 1, :]
    )


# ---------------------------------------------------------------------------
# Host-side parameter fusion + packing (one-time)
# ---------------------------------------------------------------------------
def pack_params(params):
    (w_in, b_in, wv, bv, wo, bo, w1, b1, w2, b2,
     g1, beta1, g2, beta2, w_fc, b_fc) = params
    hi = jax.lax.Precision.HIGHEST

    # seq_len == 1:  h + (h@Wv + bv)@Wo + bo  ==  h @ (I + Wv@Wo) + (bv@Wo + bo)
    eye = jnp.eye(HIDDEN, dtype=jnp.float32)
    w_attn = eye[None] + jnp.einsum("lij,ljk->lik", wv, wo, precision=hi)
    b_attn = jnp.einsum("lij,ljk->lik", bv, wo, precision=hi) + bo

    def pad(m, rows, cols):
        return jnp.zeros((rows, cols), jnp.float32).at[:m.shape[0], :m.shape[1]].set(m)

    w_blocks = [pad(w_in, INPUT_DIM, LANE)]
    for l in range(N_LAYERS):
        w_blocks.append(pad(w_attn[l], LANE, LANE))
        w_blocks.append(pad(w1[l], LANE, LANE))
        w_blocks.append(pad(w2[l], LANE, LANE))
    w_blocks.append(pad(w_fc, LANE, LANE))
    w_slab = jnp.concatenate(w_blocks, axis=0)
    assert w_slab.shape == (W_ROWS, LANE)

    b_blocks = [pad(b_in, 1, LANE)]
    for l in range(N_LAYERS):
        for v in (b_attn[l], g1[l], beta1[l], b1[l], b2[l], g2[l], beta2[l]):
            b_blocks.append(pad(v, 1, LANE))
    b_blocks.append(pad(b_fc, 1, LANE))
    b_slab = jnp.concatenate(b_blocks, axis=0)
    assert b_slab.shape == (B_ROWS, LANE)

    return w_slab, b_slab


# ---------------------------------------------------------------------------
# Forward wrapper
# ---------------------------------------------------------------------------
@jax.jit
def emotion_transformer_forward(x, packed):
    """x: (B, INPUT_DIM) f32, packed = (w_slab, b_slab) -> logits (B, N_CLASSES) f32."""
    w_slab, b_slab = packed
    vmem = pl.BlockSpec(memory_space=pltpu.MemorySpace.VMEM)
    batch = x.shape[0]

    flops = 2 * batch * (
        INPUT_DIM * HIDDEN
        + N_LAYERS * (HIDDEN * HIDDEN + 2 * HIDDEN * FFN_DIM)
        + HIDDEN * N_CLASSES
    )
    bytes_accessed = 4 * (x.size + w_slab.size + b_slab.size + batch * LANE)

    out_padded = pl.pallas_call(
        emotion_transformer_kernel,
        out_shape=jax.ShapeDtypeStruct((batch, LANE), jnp.float32),
        in_specs=[vmem, vmem, vmem],
        out_specs=vmem,
        cost_estimate=pl.CostEstimate(
            flops=flops, transcendentals=0, bytes_accessed=bytes_accessed
        ),
    )(x, w_slab, b_slab)
    return out_padded[:, :N_CLASSES]


# ---------------------------------------------------------------------------
# Deterministic synthetic parameters matching the nn.Module shapes (pre-transposed)
# ---------------------------------------------------------------------------
def init_params(key):
    ks = jax.random.split(key, 16)
    s = 0.1

    def nrm(k, shape):
        return (s * jax.random.normal(k, shape)).astype(jnp.float32)

    w_in = nrm(ks[0], (INPUT_DIM, HIDDEN))
    b_in = nrm(ks[1], (1, HIDDEN))

    wv = nrm(ks[2], (N_LAYERS, HIDDEN, HIDDEN))     # V slice of in_proj_weight, transposed
    bv = nrm(ks[3], (N_LAYERS, 1, HIDDEN))
    wo = nrm(ks[4], (N_LAYERS, HIDDEN, HIDDEN))     # out_proj.weight, transposed
    bo = nrm(ks[5], (N_LAYERS, 1, HIDDEN))
    w1 = nrm(ks[6], (N_LAYERS, HIDDEN, FFN_DIM))    # linear1.weight, transposed
    b1 = nrm(ks[7], (N_LAYERS, 1, FFN_DIM))
    w2 = nrm(ks[8], (N_LAYERS, FFN_DIM, HIDDEN))    # linear2.weight, transposed
    b2 = nrm(ks[9], (N_LAYERS, 1, HIDDEN))
    g1 = jnp.ones((N_LAYERS, 1, HIDDEN), jnp.float32)
    beta1 = jnp.zeros((N_LAYERS, 1, HIDDEN), jnp.float32)
    g2 = jnp.ones((N_LAYERS, 1, HIDDEN), jnp.float32)
    beta2 = jnp.zeros((N_LAYERS, 1, HIDDEN), jnp.float32)

    w_fc = nrm(ks[10], (HIDDEN, N_CLASSES))
    b_fc = nrm(ks[11], (1, N_CLASSES))

    return (w_in, b_in, wv, bv, wo, bo, w1, b1, w2, b2,
            g1, beta1, g2, beta2, w_fc, b_fc)


if __name__ == "__main__":
    key = jax.random.PRNGKey(0)
    k_x, k_p = jax.random.split(key)
    x = jax.random.normal(k_x, (BATCH, INPUT_DIM), dtype=jnp.float32)
    params = init_params(k_p)

    packed = pack_params(params)          # one-time host-side fusion + packing (2 slabs)
    logits = emotion_transformer_forward(x, packed)
    jax.block_until_ready(logits)

    assert logits.shape == (BATCH, N_CLASSES)
    assert logits.dtype == jnp.float32
    assert bool(jnp.isfinite(logits).all())
    print("KERNEL_OK")
</pallas_src>

<mosaic_0001>
module attributes {stable_mosaic.version = 11 : i64} {
  func.func @emotion_transformer_kernel(%arg0: memref<8x16xf32, #tpu.memory_space<vmem>>, %arg1: memref<912x128xf32, #tpu.memory_space<vmem>>, %arg2: memref<16x128xf32, #tpu.memory_space<vmem>>, %arg3: memref<8x128xf32, #tpu.memory_space<vmem>>) attributes {dimension_semantics = [], scalar_prefetch = 0 : i64, scratch_operands = 0 : i64, tpu.core_type = #tpu.core_type<tc>} {
    %c0 = arith.constant 0 : index
    %c0_0 = arith.constant 0 : index
    %0 = vector.load %arg1[%c0, %c0_0] : memref<912x128xf32, #tpu.memory_space<vmem>>, vector<16x128xf32>
    %c0_1 = arith.constant 0 : index
    %c0_2 = arith.constant 0 : index
    %1 = vector.load %arg0[%c0_1, %c0_2] : memref<8x16xf32, #tpu.memory_space<vmem>>, vector<8x16xf32>
    %cst = arith.constant dense<0.000000e+00> : vector<8x128xf32>
    %2 = tpu.matmul %1, %0, %cst {dimension_numbers = #tpu.dot_dimension_numbers<[1], [0], [0], [1], [0, 0, 1, 1], [], []>} : vector<8x16xf32>, vector<16x128xf32>, vector<8x128xf32> -> vector<8x128xf32>
    %c0_3 = arith.constant 0 : index
    %c0_4 = arith.constant 0 : index
    %3 = vector.load %arg2[%c0_3, %c0_4] : memref<16x128xf32, #tpu.memory_space<vmem>>, vector<1x128xf32>
    %4 = vector.broadcast %3 : vector<1x128xf32> to vector<8x128xf32>
    %5 = arith.addf %2, %4 : vector<8x128xf32>
    %c16 = arith.constant 16 : index
    %c0_5 = arith.constant 0 : index
    %6 = vector.load %arg1[%c16, %c0_5] : memref<912x128xf32, #tpu.memory_space<vmem>>, vector<128x128xf32>
    %c144 = arith.constant 144 : index
    %c0_6 = arith.constant 0 : index
    %7 = vector.load %arg1[%c144, %c0_6] : memref<912x128xf32, #tpu.memory_space<vmem>>, vector<128x128xf32>
    %c272 = arith.constant 272 : index
    %c0_7 = arith.constant 0 : index
    %8 = vector.load %arg1[%c272, %c0_7] : memref<912x128xf32, #tpu.memory_space<vmem>>, vector<128x128xf32>
    %c1 = arith.constant 1 : index
    %c0_8 = arith.constant 0 : index
    %9 = vector.load %arg2[%c1, %c0_8] : memref<16x128xf32, #tpu.memory_space<vmem>>, vector<1x128xf32>
    %c2 = arith.constant 2 : index
    %c0_9 = arith.constant 0 : index
    %10 = vector.load %arg2[%c2, %c0_9] : memref<16x128xf32, #tpu.memory_space<vmem>>, vector<1x128xf32>
    %c3 = arith.constant 3 : index
    %c0_10 = arith.constant 0 : index
    %11 = vector.load %arg2[%c3, %c0_10] : memref<16x128xf32, #tpu.memory_space<vmem>>, vector<1x128xf32>
    %c4 = arith.constant 4 : index
    %c0_11 = arith.constant 0 : index
    %12 = vector.load %arg2[%c4, %c0_11] : memref<16x128xf32, #tpu.memory_space<vmem>>, vector<1x128xf32>
    %c5 = arith.constant 5 : index
    %c0_12 = arith.constant 0 : index
    %13 = vector.load %arg2[%c5, %c0_12] : memref<16x128xf32, #tpu.memory_space<vmem>>, vector<1x128xf32>
    %c6 = arith.constant 6 : index
    %c0_13 = arith.constant 0 : index
    %14 = vector.load %arg2[%c6, %c0_13] : memref<16x128xf32, #tpu.memory_space<vmem>>, vector<1x128xf32>
    %c7 = arith.constant 7 : index
    %c0_14 = arith.constant 0 : index
    %15 = vector.load %arg2[%c7, %c0_14] : memref<16x128xf32, #tpu.memory_space<vmem>>, vector<1x128xf32>
    %cst_15 = arith.constant dense<0.000000e+00> : vector<8x128xf32>
    %16 = tpu.matmul %5, %6, %cst_15 {dimension_numbers = #tpu.dot_dimension_numbers<[1], [0], [0], [1], [0, 0, 1, 1], [], []>} : vector<8x128xf32>, vector<128x128xf32>, vector<8x128xf32> -> vector<8x128xf32>
    %17 = vector.broadcast %9 : vector<1x128xf32> to vector<8x128xf32>
    %18 = arith.addf %16, %17 : vector<8x128xf32>
    %cst_16 = arith.constant dense<0.000000e+00> : vector<8xf32>
    %19 = vector.multi_reduction <add>, %18, %cst_16 [1] : vector<8x128xf32> to vector<8xf32>
    %20 = vector.shape_cast %19 : vector<8xf32> to vector<8x1xf32>
    %cst_17 = arith.constant 3.125000e-02 : f32
    %21 = vector.broadcast %cst_17 : f32 to vector<8x1xf32>
    %22 = arith.mulf %20, %21 : vector<8x1xf32>
    %23 = arith.mulf %18, %18 : vector<8x128xf32>
    %cst_18 = arith.constant dense<0.000000e+00> : vector<8xf32>
    %24 = vector.multi_reduction <add>, %23, %cst_18 [1] : vector<8x128xf32> to vector<8xf32>
    %25 = vector.shape_cast %24 : vector<8xf32> to vector<8x1xf32>
    %cst_19 = arith.constant 3.125000e-02 : f32
    %26 = vector.broadcast %cst_19 : f32 to vector<8x1xf32>
    %27 = arith.mulf %25, %26 : vector<8x1xf32>
    %28 = arith.mulf %22, %22 : vector<8x1xf32>
    %29 = arith.subf %27, %28 : vector<8x1xf32>
    %cst_20 = arith.constant 9.99999974E-6 : f32
    %30 = vector.broadcast %cst_20 : f32 to vector<8x1xf32>
    %31 = arith.addf %29, %30 : vector<8x1xf32>
    %32 = math.rsqrt %31 : vector<8x1xf32>
    %33 = vector.broadcast %22 : vector<8x1xf32> to vector<8x128xf32>
    %34 = arith.subf %18, %33 : vector<8x128xf32>
    %35 = vector.broadcast %32 : vector<8x1xf32> to vector<8x128xf32>
    %36 = arith.mulf %34, %35 : vector<8x128xf32>
    %37 = vector.broadcast %10 : vector<1x128xf32> to vector<8x128xf32>
    %38 = arith.mulf %36, %37 : vector<8x128xf32>
    %39 = vector.broadcast %11 : vector<1x128xf32> to vector<8x128xf32>
    %40 = arith.addf %38, %39 : vector<8x128xf32>
    %cst_21 = arith.constant dense<0.000000e+00> : vector<8x128xf32>
    %41 = tpu.matmul %40, %7, %cst_21 {dimension_numbers = #tpu.dot_dimension_numbers<[1], [0], [0], [1], [0, 0, 1, 1], [], []>} : vector<8x128xf32>, vector<128x128xf32>, vector<8x128xf32> -> vector<8x128xf32>
    %42 = vector.broadcast %12 : vector<1x128xf32> to vector<8x128xf32>
    %43 = arith.addf %41, %42 : vector<8x128xf32>
    %cst_22 = arith.constant 0.000000e+00 : f32
    %44 = vector.broadcast %cst_22 : f32 to vector<8x128xf32>
    %45 = arith.maximumf %43, %44 : vector<8x128xf32>
    %cst_23 = arith.constant dense<0.000000e+00> : vector<8x128xf32>
    %46 = tpu.matmul %45, %8, %cst_23 {dimension_numbers = #tpu.dot_dimension_numbers<[1], [0], [0], [1], [0, 0, 1, 1], [], []>} : vector<8x128xf32>, vector<128x128xf32>, vector<8x128xf32> -> vector<8x128xf32>
    %47 = vector.broadcast %13 : vector<1x128xf32> to vector<8x128xf32>
    %48 = arith.addf %46, %47 : vector<8x128xf32>
    %49 = arith.addf %40, %48 : vector<8x128xf32>
    %cst_24 = arith.constant dense<0.000000e+00> : vector<8xf32>
    %50 = vector.multi_reduction <add>, %49, %cst_24 [1] : vector<8x128xf32> to vector<8xf32>
    %51 = vector.shape_cast %50 : vector<8xf32> to vector<8x1xf32>
    %cst_25 = arith.constant 3.125000e-02 : f32
    %52 = vector.broadcast %cst_25 : f32 to vector<8x1xf32>
    %53 = arith.mulf %51, %52 : vector<8x1xf32>
    %54 = arith.mulf %49, %49 : vector<8x128xf32>
    %cst_26 = arith.constant dense<0.000000e+00> : vector<8xf32>
    %55 = vector.multi_reduction <add>, %54, %cst_26 [1] : vector<8x128xf32> to vector<8xf32>
    %56 = vector.shape_cast %55 : vector<8xf32> to vector<8x1xf32>
    %cst_27 = arith.constant 3.125000e-02 : f32
    %57 = vector.broadcast %cst_27 : f32 to vector<8x1xf32>
    %58 = arith.mulf %56, %57 : vector<8x1xf32>
    %59 = arith.mulf %53, %53 : vector<8x1xf32>
    %60 = arith.subf %58, %59 : vector<8x1xf32>
    %cst_28 = arith.constant 9.99999974E-6 : f32
    %61 = vector.broadcast %cst_28 : f32 to vector<8x1xf32>
    %62 = arith.addf %60, %61 : vector<8x1xf32>
    %63 = math.rsqrt %62 : vector<8x1xf32>
    %64 = vector.broadcast %53 : vector<8x1xf32> to vector<8x128xf32>
    %65 = arith.subf %49, %64 : vector<8x128xf32>
    %66 = vector.broadcast %63 : vector<8x1xf32> to vector<8x128xf32>
    %67 = arith.mulf %65, %66 : vector<8x128xf32>
    %68 = vector.broadcast %14 : vector<1x128xf32> to vector<8x128xf32>
    %69 = arith.mulf %67, %68 : vector<8x128xf32>
    %70 = vector.broadcast %15 : vector<1x128xf32> to vector<8x128xf32>
    %71 = arith.addf %69, %70 : vector<8x128xf32>
    %c400 = arith.constant 400 : index
    %c0_29 = arith.constant 0 : index
    %72 = vector.load %arg1[%c400, %c0_29] : memref<912x128xf32, #tpu.memory_space<vmem>>, vector<128x128xf32>
    %c528 = arith.constant 528 : index
    %c0_30 = arith.constant 0 : index
    %73 = vector.load %arg1[%c528, %c0_30] : memref<912x128xf32, #tpu.memory_space<vmem>>, vector<128x128xf32>
    %c656 = arith.constant 656 : index
    %c0_31 = arith.constant 0 : index
    %74 = vector.load %arg1[%c656, %c0_31] : memref<912x128xf32, #tpu.memory_space<vmem>>, vector<128x128xf32>
    %c8 = arith.constant 8 : index
    %c0_32 = arith.constant 0 : index
    %75 = vector.load %arg2[%c8, %c0_32] : memref<16x128xf32, #tpu.memory_space<vmem>>, vector<1x128xf32>
    %c9 = arith.constant 9 : index
    %c0_33 = arith.constant 0 : index
    %76 = vector.load %arg2[%c9, %c0_33] : memref<16x128xf32, #tpu.memory_space<vmem>>, vector<1x128xf32>
    %c10 = arith.constant 10 : index
    %c0_34 = arith.constant 0 : index
    %77 = vector.load %arg2[%c10, %c0_34] : memref<16x128xf32, #tpu.memory_space<vmem>>, vector<1x128xf32>
    %c11 = arith.constant 11 : index
    %c0_35 = arith.constant 0 : index
    %78 = vector.load %arg2[%c11, %c0_35] : memref<16x128xf32, #tpu.memory_space<vmem>>, vector<1x128xf32>
    %c12 = arith.constant 12 : index
    %c0_36 = arith.constant 0 : index
    %79 = vector.load %arg2[%c12, %c0_36] : memref<16x128xf32, #tpu.memory_space<vmem>>, vector<1x128xf32>
    %c13 = arith.constant 13 : index
    %c0_37 = arith.constant 0 : index
    %80 = vector.load %arg2[%c13, %c0_37] : memref<16x128xf32, #tpu.memory_space<vmem>>, vector<1x128xf32>
    %c14 = arith.constant 14 : index
    %c0_38 = arith.constant 0 : index
    %81 = vector.load %arg2[%c14, %c0_38] : memref<16x128xf32, #tpu.memory_space<vmem>>, vector<1x128xf32>
    %cst_39 = arith.constant dense<0.000000e+00> : vector<8x128xf32>
    %82 = tpu.matmul %71, %72, %cst_39 {dimension_numbers = #tpu.dot_dimension_numbers<[1], [0], [0], [1], [0, 0, 1, 1], [], []>} : vector<8x128xf32>, vector<128x128xf32>, vector<8x128xf32> -> vector<8x128xf32>
    %83 = vector.broadcast %75 : vector<1x128xf32> to vector<8x128xf32>
    %84 = arith.addf %82, %83 : vector<8x128xf32>
    %cst_40 = arith.constant dense<0.000000e+00> : vector<8xf32>
    %85 = vector.multi_reduction <add>, %84, %cst_40 [1] : vector<8x128xf32> to vector<8xf32>
    %86 = vector.shape_cast %85 : vector<8xf32> to vector<8x1xf32>
    %cst_41 = arith.constant 3.125000e-02 : f32
    %87 = vector.broadcast %cst_41 : f32 to vector<8x1xf32>
    %88 = arith.mulf %86, %87 : vector<8x1xf32>
    %89 = arith.mulf %84, %84 : vector<8x128xf32>
    %cst_42 = arith.constant dense<0.000000e+00> : vector<8xf32>
    %90 = vector.multi_reduction <add>, %89, %cst_42 [1] : vector<8x128xf32> to vector<8xf32>
    %91 = vector.shape_cast %90 : vector<8xf32> to vector<8x1xf32>
    %cst_43 = arith.constant 3.125000e-02 : f32
    %92 = vector.broadcast %cst_43 : f32 to vector<8x1xf32>
    %93 = arith.mulf %91, %92 : vector<8x1xf32>
    %94 = arith.mulf %88, %88 : vector<8x1xf32>
    %95 = arith.subf %93, %94 : vector<8x1xf32>
    %cst_44 = arith.constant 9.99999974E-6 : f32
    %96 = vector.broadcast %cst_44 : f32 to vector<8x1xf32>
    %97 = arith.addf %95, %96 : vector<8x1xf32>
    %98 = math.rsqrt %97 : vector<8x1xf32>
    %99 = vector.broadcast %88 : vector<8x1xf32> to vector<8x128xf32>
    %100 = arith.subf %84, %99 : vector<8x128xf32>
    %101 = vector.broadcast %98 : vector<8x1xf32> to vector<8x128xf32>
    %102 = arith.mulf %100, %101 : vector<8x128xf32>
    %103 = vector.broadcast %76 : vector<1x128xf32> to vector<8x128xf32>
    %104 = arith.mulf %102, %103 : vector<8x128xf32>
    %105 = vector.broadcast %77 : vector<1x128xf32> to vector<8x128xf32>
    %106 = arith.addf %104, %105 : vector<8x128xf32>
    %cst_45 = arith.constant dense<0.000000e+00> : vector<8x128xf32>
    %107 = tpu.matmul %106, %73, %cst_45 {dimension_numbers = #tpu.dot_dimension_numbers<[1], [0], [0], [1], [0, 0, 1, 1], [], []>} : vector<8x128xf32>, vector<128x128xf32>, vector<8x128xf32> -> vector<8x128xf32>
    %108 = vector.broadcast %78 : vector<1x128xf32> to vector<8x128xf32>
    %109 = arith.addf %107, %108 : vector<8x128xf32>
    %cst_46 = arith.constant 0.000000e+00 : f32
    %110 = vector.broadcast %cst_46 : f32 to vector<8x128xf32>
    %111 = arith.maximumf %109, %110 : vector<8x128xf32>
    %cst_47 = arith.constant dense<0.000000e+00> : vector<8x128xf32>
    %112 = tpu.matmul %111, %74, %cst_47 {dimension_numbers = #tpu.dot_dimension_numbers<[1], [0], [0], [1], [0, 0, 1, 1], [], []>} : vector<8x128xf32>, vector<128x128xf32>, vector<8x128xf32> -> vector<8x128xf32>
    %113 = vector.broadcast %79 : vector<1x128xf32> to vector<8x128xf32>
    %114 = arith.addf %112, %113 : vector<8x128xf32>
    %115 = arith.addf %106, %114 : vector<8x128xf32>
    %cst_48 = arith.constant dense<0.000000e+00> : vector<8xf32>
    %116 = vector.multi_reduction <add>, %115, %cst_48 [1] : vector<8x128xf32> to vector<8xf32>
    %117 = vector.shape_cast %116 : vector<8xf32> to vector<8x1xf32>
    %cst_49 = arith.constant 3.125000e-02 : f32
    %118 = vector.broadcast %cst_49 : f32 to vector<8x1xf32>
    %119 = arith.mulf %117, %118 : vector<8x1xf32>
    %120 = arith.mulf %115, %115 : vector<8x128xf32>
    %cst_50 = arith.constant dense<0.000000e+00> : vector<8xf32>
    %121 = vector.multi_reduction <add>, %120, %cst_50 [1] : vector<8x128xf32> to vector<8xf32>
    %122 = vector.shape_cast %121 : vector<8xf32> to vector<8x1xf32>
    %cst_51 = arith.constant 3.125000e-02 : f32
    %123 = vector.broadcast %cst_51 : f32 to vector<8x1xf32>
    %124 = arith.mulf %122, %123 : vector<8x1xf32>
    %125 = arith.mulf %119, %119 : vector<8x1xf32>
    %126 = arith.subf %124, %125 : vector<8x1xf32>
    %cst_52 = arith.constant 9.99999974E-6 : f32
    %127 = vector.broadcast %cst_52 : f32 to vector<8x1xf32>
    %128 = arith.addf %126, %127 : vector<8x1xf32>
    %129 = math.rsqrt %128 : vector<8x1xf32>
    %130 = vector.broadcast %119 : vector<8x1xf32> to vector<8x128xf32>
    %131 = arith.subf %115, %130 : vector<8x128xf32>
    %132 = vector.broadcast %129 : vector<8x1xf32> to vector<8x128xf32>
    %133 = arith.mulf %131, %132 : vector<8x128xf32>
    %134 = vector.broadcast %80 : vector<1x128xf32> to vector<8x128xf32>
    %135 = arith.mulf %133, %134 : vector<8x128xf32>
    %136 = vector.broadcast %81 : vector<1x128xf32> to vector<8x128xf32>
    %137 = arith.addf %135, %136 : vector<8x128xf32>
    %c784 = arith.constant 784 : index
    %c0_53 = arith.constant 0 : index
    %138 = vector.load %arg1[%c784, %c0_53] : memref<912x128xf32, #tpu.memory_space<vmem>>, vector<128x128xf32>
    %cst_54 = arith.constant dense<0.000000e+00> : vector<8x128xf32>
    %139 = tpu.matmul %137, %138, %cst_54 {dimension_numbers = #tpu.dot_dimension_numbers<[1], [0], [0], [1], [0, 0, 1, 1], [], []>} : vector<8x128xf32>, vector<128x128xf32>, vector<8x128xf32> -> vector<8x128xf32>
    %c15 = arith.constant 15 : index
    %c0_55 = arith.constant 0 : index
    %140 = vector.load %arg2[%c15, %c0_55] : memref<16x128xf32, #tpu.memory_space<vmem>>, vector<1x128xf32>
    %141 = vector.broadcast %140 : vector<1x128xf32> to vector<8x128xf32>
    %142 = arith.addf %139, %141 : vector<8x128xf32>
    %c0_56 = arith.constant 0 : index
    %c0_57 = arith.constant 0 : index
    %143 = vector.load %arg3[%c0_56, %c0_57] : memref<8x128xf32, #tpu.memory_space<vmem>>, vector<8x128xf32>
    tpu.vector_store %arg3[%c0_56, %c0_57], %142 {strides = array<i32>} : memref<8x128xf32, #tpu.memory_space<vmem>>, vector<8x128xf32>,
    return
  }
}

</mosaic_0001>

<llo_original>
// kernel: emotion_transformer_forward.1
$region0: #{emotion_transformer_forward.1}
  #allocation0 [shape = 'u32[]', space=smem, size = 0x4, offset = 0x4, fixed_abs, tag = 'smem constant byte address 0x4 - core index']
  #allocation1 [shape = 'u32[72,128]{1,0:T(1,128)}', space=vmem, size = 0x9000, scoped, tag = 'internal scratch']
  %s0 = inlined_call_operand.hbm [shape: f32[8,16], index: 0, kind: input, shape index: {}]
  %s1 = inlined_call_operand.hbm [shape: f32[912,128], index: 1, kind: input, shape index: {}]
  %s2 = inlined_call_operand.hbm [shape: f32[16,128], index: 2, kind: input, shape index: {}]
  %s3 = inlined_call_operand.vmem [shape: f32[8,128], index: 3, kind: output, shape index: {}]
  %s4 = sld [smem:[#allocation0]]
  $region34: #{emotion_transformer_forward.1} parent=0
    _
  %s6 = ssub.s32 1, %s4
  %s7 = scalar_select 0, %s6, %s4
  $region1: #{emotion_transformer_forward.1} parent=0
    #allocation2 [shape = 'u8[4096]{0}', space=vmem, size = 0x1000, scoped, tag = 'input window, operand 0, single buffered']
    #allocation3 [shape = 's32[1]{0}', space=sflag, size = 0x4, scoped, tag = 'scoped memory for emotion_transformer_forward.1']
    #allocation4 [shape = 'u8[466944]{0}', space=vmem, size = 0x72000, scoped, tag = 'input window, operand 1, single buffered']
    #allocation5 [shape = 's32[1]{0}', space=sflag, size = 0x4, scoped, tag = 'scoped memory for emotion_transformer_forward.1']
    #allocation6 [shape = 'u8[8192]{0}', space=vmem, size = 0x2000, scoped, tag = 'input window, operand 2, single buffered']
    %8 = vsyncpa [#allocation3], 0
    %9 = vsyncpa [#allocation5], 0
    // Predicated region
    $region2: #{emotion_transformer_forward.1} parent=1 // pred_check
      _
    $region3: #{emotion_transformer_forward.1} parent=1 // pred_check_branch
      %11 = sbr.rel (0) target = $region5
    $region4: #{emotion_transformer_forward.1} parent=1 // pred_region
      %13 = vsyncadd [#allocation3], 0
      %s15 = sshll.u32 %s0, 4
      %s16 = int_to_ptr.hbm [resolvable:$true] %s15
      %s17 = sshll.u32 [#allocation2], 4
      %s18 = int_to_ptr.vmem [resolvable:$true] %s17
      %20 = dma.hbm_to_vmem [thread:$0]  %s16, 128, %s18, [#allocation3]
    $region5: #{emotion_transformer_forward.1} parent=1 // pred_fallthru
      _
    // Predicated region
    $region6: #{emotion_transformer_forward.1} parent=1 // pred_check
      _
    $region7: #{emotion_transformer_forward.1} parent=1 // pred_check_branch
      %22 = sbr.rel (0) target = $region9
    $region8: #{emotion_transformer_forward.1} parent=1 // pred_region
      %24 = vsyncadd [#allocation5], 0
      %s25 = sshll.u32 %s1, 4
      %s26 = int_to_ptr.hbm [resolvable:$true] %s25
      %s27 = sshll.u32 [#allocation4], 4
      %s28 = int_to_ptr.vmem [resolvable:$true] %s27
      %33 = dma.hbm_to_vmem [thread:$0]  %s26, 14592, %s28, [#allocation5], 128, 128, 8
    $region9: #{emotion_transformer_forward.1} parent=1 // pred_fallthru
      _
    // Predicated region
    $region10: #{emotion_transformer_forward.1} parent=1 // pred_check
      _
    $region11: #{emotion_transformer_forward.1} parent=1 // pred_check_branch
      %35 = sbr.rel (0) target = $region13
    $region12: #{emotion_transformer_forward.1} parent=1 // pred_region
      %37 = vsyncadd [#allocation5], 0
      %s38 = sshll.u32 %s2, 4
      %s39 = int_to_ptr.hbm [resolvable:$true] %s38
      %s40 = sshll.u32 [#allocation6], 4
      %s41 = int_to_ptr.vmem [resolvable:$true] %s40
      %46 = dma.hbm_to_vmem [thread:$0]  %s39, 256, %s41, [#allocation5], 128, 128, 8
    $region13: #{emotion_transformer_forward.1} parent=1 // pred_fallthru
      _
    // Predicated region
    $region14: #{emotion_transformer_forward.1} parent=1 // pred_check
      _
    $region15: #{emotion_transformer_forward.1} parent=1 // pred_check_branch
      %48 = sbr.rel (0) target = $region17
    $region16: #{emotion_transformer_forward.1} parent=1 // pred_region
      %50 = dma.done [#allocation3], 128
    $region17: #{emotion_transformer_forward.1} parent=1 // pred_fallthru
      _
    // Predicated region
    $region18: #{emotion_transformer_forward.1} parent=1 // pred_check
      _
    $region19: #{emotion_transformer_forward.1} parent=1 // pred_check_branch
      %52 = sbr.rel (0) target = $region21
    $region20: #{emotion_transformer_forward.1} parent=1 // pred_region
      %54 = dma.done [#allocation5], 14592
    $region21: #{emotion_transformer_forward.1} parent=1 // pred_fallthru
      _
    // Predicated region
    $region22: #{emotion_transformer_forward.1} parent=1 // pred_check
      _
    $region23: #{emotion_transformer_forward.1} parent=1 // pred_check_branch
      %56 = sbr.rel (0) target = $region25
    $region24: #{emotion_transformer_forward.1} parent=1 // pred_region
      %58 = dma.done [#allocation5], 256
    $region25: #{emotion_transformer_forward.1} parent=1 // pred_fallthru
      _
    %v59 = vld [vmem:[#allocation4] sm:$0xff]
    %v60 = vld [vmem:[#allocation4 + $0x8] sm:$0xff]
    %v61 = vld [vmem:[#allocation2] sm:$0xff]
    %v62 = vld [vmem:[#allocation6] sm:$0x1]
    %v63 = vperm.slane %v62, 0
    %vm64 = vcmask 130048
    %v66 = vsel %vm64, %v61, 0
    %68 = vmatpush.msra.mxu0 0.0
    %69 = vmatpush.msra.mxu0 0.0
    %70 = vmatpush.msra.mxu0 0.0
    %71 = vmatpush.msra.mxu0 0.0
    %72 = vmatpush.msra.mxu0 0.0
    %73 = vmatpush.msra.mxu0 0.0
    %74 = vmatpush.msra.mxu0 0.0
    %75 = vmatpush.msra.mxu0 0.0
    %76 = vmatpush.msra.mxu0 0.0
    %77 = vmatpush.msra.mxu0 0.0
    %78 = vmatpush.msra.mxu0 0.0
    %79 = vmatpush.msra.mxu0 0.0
    %80 = vmatpush.msra.mxu0 0.0
    %81 = vmatpush.msra.mxu0 0.0
    %82 = vmatpush.msra.mxu0 %v60
    %83 = vmatpush.msra.mxu0 %v59
    %84 = vmatmul.f32.gmra.mxu0 %v66
    %v85 = vpop.f32.mrf.mxu0
    %v86 = vadd.f32 %v63, %v85
    %87 = vdwg.mxu0
    %v88 = vld [vmem:[#allocation4 + $0x10] sm:$0xff]
    %v89 = vld [vmem:[#allocation4 + $0x18] sm:$0xff]
    %v90 = vld [vmem:[#allocation4 + $0x20] sm:$0xff]
    %v91 = vld [vmem:[#allocation4 + $0x28] sm:$0xff]
    %v92 = vld [vmem:[#allocation4 + $0x30] sm:$0xff]
    %v93 = vld [vmem:[#allocation4 + $0x38] sm:$0xff]
    %v94 = vld [vmem:[#allocation4 + $0x40] sm:$0xff]
    %v95 = vld [vmem:[#allocation4 + $0x48] sm:$0xff]
    %v96 = vld [vmem:[#allocation4 + $0x50] sm:$0xff]
    %v97 = vld [vmem:[#allocation4 + $0x58] sm:$0xff]
    %v98 = vld [vmem:[#allocation4 + $0x60] sm:$0xff]
    %v99 = vld [vmem:[#allocation4 + $0x68] sm:$0xff]
    %v100 = vld [vmem:[#allocation4 + $0x70] sm:$0xff]
    %v101 = vld [vmem:[#allocation4 + $0x78] sm:$0xff]
    %v102 = vld [vmem:[#allocation4 + $0x80] sm:$0xff]
    %v103 = vld [vmem:[#allocation4 + $0x88] sm:$0xff]
    %v104 = vld [vmem:[#allocation4 + $0x90] sm:$0xff]
    %v105 = vld [vmem:[#allocation4 + $0x98] sm:$0xff]
    %v106 = vld [vmem:[#allocation4 + $0xa0] sm:$0xff]
    %v107 = vld [vmem:[#allocation4 + $0xa8] sm:$0xff]
    %v108 = vld [vmem:[#allocation4 + $0xb0] sm:$0xff]
    %v109 = vld [vmem:[#allocation4 + $0xb8] sm:$0xff]
    %v110 = vld [vmem:[#allocation4 + $0xc0] sm:$0xff]
    %v111 = vld [vmem:[#allocation4 + $0xc8] sm:$0xff]
    %v112 = vld [vmem:[#allocation4 + $0xd0] sm:$0xff]
    %v113 = vld [vmem:[#allocation4 + $0xd8] sm:$0xff]
    %v114 = vld [vmem:[#allocation4 + $0xe0] sm:$0xff]
    %v115 = vld [vmem:[#allocation4 + $0xe8] sm:$0xff]
    %v116 = vld [vmem:[#allocation4 + $0xf0] sm:$0xff]
    %v117 = vld [vmem:[#allocation4 + $0xf8] sm:$0xff]
    %v118 = vld [vmem:[#allocation4 + $0x100] sm:$0xff]
    %v119 = vld [vmem:[#allocation4 + $0x108] sm:$0xff]
    %v120 = vld [vmem:[#allocation4 + $0x110] sm:$0xff]
    %v121 = vld [vmem:[#allocation4 + $0x118] sm:$0xff]
    %v122 = vld [vmem:[#allocation4 + $0x120] sm:$0xff]
    %v123 = vld [vmem:[#allocation4 + $0x128] sm:$0xff]
    %v124 = vld [vmem:[#allocation4 + $0x130] sm:$0xff]
    %v125 = vld [vmem:[#allocation4 + $0x138] sm:$0xff]
    %v126 = vld [vmem:[#allocation4 + $0x140] sm:$0xff]
    %v127 = vld [vmem:[#allocation4 + $0x148] sm:$0xff]
    %v128 = vld [vmem:[#allocation4 + $0x150] sm:$0xff]
    %v129 = vld [vmem:[#allocation4 + $0x158] sm:$0xff]
    %v130 = vld [vmem:[#allocation4 + $0x160] sm:$0xff]
    %v131 = vld [vmem:[#allocation4 + $0x168] sm:$0xff]
    %v132 = vld [vmem:[#allocation4 + $0x170] sm:$0xff]
    %v133 = vld [vmem:[#allocation4 + $0x178] sm:$0xff]
    %v134 = vld [vmem:[#allocation4 + $0x180] sm:$0xff]
    %v135 = vld [vmem:[#allocation4 + $0x188] sm:$0xff]
    %v136 = vld [vmem:[#allocation6 + $0x1] sm:$0x1]
    %v137 = vld [vmem:[#allocation6 + $0x2] sm:$0x1]
    %v138 = vld [vmem:[#allocation6 + $0x3] sm:$0x1]
    %v139 = vld [vmem:[#allocation6 + $0x4] sm:$0x1]
    %v140 = vld [vmem:[#allocation6 + $0x5] sm:$0x1]
    %v141 = vld [vmem:[#allocation6 + $0x6] sm:$0x1]
    %v142 = vld [vmem:[#allocation6 + $0x7] sm:$0x1]
    %v143 = vperm.slane %v136, 0
    %144 = vmatpush.msra.mxu0 %v103
    %145 = vmatpush.msra.mxu0 %v102
    %146 = vmatpush.msra.mxu0 %v101
    %147 = vmatpush.msra.mxu0 %v100
    %148 = vmatpush.msra.mxu0 %v99
    %149 = vmatpush.msra.mxu0 %v98
    %150 = vmatpush.msra.mxu0 %v97
    %151 = vmatpush.msra.mxu0 %v96
    %152 = vmatpush.msra.mxu0 %v95
    %153 = vmatpush.msra.mxu0 %v94
    %154 = vmatpush.msra.mxu0 %v93
    %155 = vmatpush.msra.mxu0 %v92
    %156 = vmatpush.msra.mxu0 %v91
    %157 = vmatpush.msra.mxu0 %v90
    %158 = vmatpush.msra.mxu0 %v89
    %159 = vmatpush.msra.mxu0 %v88
    %160 = vmatmul.f32.gmra.mxu0 %v86
    %v161 = vpop.f32.mrf.mxu0
    %v162 = vadd.f32 %v143, %v161
    %163 = vdwg.mxu0
    %164 = vadd.xlane.f32.xlu0 %v162
    %v165 = vpop.xlane.xlu0 %164
    %v166 = vmul.f32 %v165, 0.03125
    %v167 = vmul.f32 %v162, %v162
    %168 = vadd.xlane.f32.xlu0 %v167
    %v169 = vpop.xlane.xlu0 %168
    %v170 = vmul.f32 %v169, 0.03125
    %v171 = vmul.f32 %v166, %v166
    %v172 = vsub.f32 %v170, %v171
    %v173 = vadd.f32 %v172, 1e-05
    %v174 = vrsqrt.pop %v173
    %v175 = vmul.f32 %v174, %v173
    %v176 = vmul.f32 %v175, %v174
    %v177 = vmul.f32 0.5, %v176
    %v178 = vsub.f32 1.5, %v177
    %v179 = vmul.f32 %v174, %v178
    %vm180 = vweird.f32 %v173
    %vm181 = vweird.f32 %v174
    %vm182 = vmor %vm180, %vm181
    %v183 = vsel %vm182, %v174, %v179
    %v184 = vsub.f32 %v162, %v166
    %v185 = vmul.f32 %v184, %v183
    %v186 = vperm.slane %v137, 0
    %v187 = vmul.f32 %v185, %v186
    %v188 = vperm.slane %v138, 0
    %v189 = vadd.f32 %v187, %v188
    %v190 = vperm.slane %v139, 0
    %191 = vmatpush.msra.mxu0 %v119
    %192 = vmatpush.msra.mxu0 %v118
    %193 = vmatpush.msra.mxu0 %v117
    %194 = vmatpush.msra.mxu0 %v116
    %195 = vmatpush.msra.mxu0 %v115
    %196 = vmatpush.msra.mxu0 %v114
    %197 = vmatpush.msra.mxu0 %v113
    %198 = vmatpush.msra.mxu0 %v112
    %199 = vmatpush.msra.mxu0 %v111
    %200 = vmatpush.msra.mxu0 %v110
    %201 = vmatpush.msra.mxu0 %v109
    %202 = vmatpush.msra.mxu0 %v108
    %203 = vmatpush.msra.mxu0 %v107
    %204 = vmatpush.msra.mxu0 %v106
    %205 = vmatpush.msra.mxu0 %v105
    %206 = vmatpush.msra.mxu0 %v104
    %207 = vmatmul.f32.gmra.mxu0 %v189
    %v208 = vpop.f32.mrf.mxu0
    %v209 = vadd.f32 %v190, %v208
    %210 = vdwg.mxu0
    %v211 = vmax.f32 %v209, 0.0
    %v212 = vperm.slane %v140, 0
    %213 = vmatpush.msra.mxu0 %v135
    %214 = vmatpush.msra.mxu0 %v134
    %215 = vmatpush.msra.mxu0 %v133
    %216 = vmatpush.msra.mxu0 %v132
    %217 = vmatpush.msra.mxu0 %v131
    %218 = vmatpush.msra.mxu0 %v130
    %219 = vmatpush.msra.mxu0 %v129
    %220 = vmatpush.msra.mxu0 %v128
    %221 = vmatpush.msra.mxu0 %v127
    %222 = vmatpush.msra.mxu0 %v126
    %223 = vmatpush.msra.mxu0 %v125
    %224 = vmatpush.msra.mxu0 %v124
    %225 = vmatpush.msra.mxu0 %v123
    %226 = vmatpush.msra.mxu0 %v122
    %227 = vmatpush.msra.mxu0 %v121
    %228 = vmatpush.msra.mxu0 %v120
    %229 = vmatmul.f32.gmra.mxu0 %v211
    %v230 = vpop.f32.mrf.mxu0
    %v231 = vadd.f32 %v212, %v230
    %232 = vdwg.mxu0
    %v233 = vadd.f32 %v189, %v231
    %234 = vadd.xlane.f32.xlu0 %v233
    %v235 = vpop.xlane.xlu0 %234
    %v236 = vmul.f32 %v235, 0.03125
    %v237 = vmul.f32 %v233, %v233
    %238 = vadd.xlane.f32.xlu0 %v237
    %v239 = vpop.xlane.xlu0 %238
    %v240 = vmul.f32 %v239, 0.03125
    %v241 = vmul.f32 %v236, %v236
    %v242 = vsub.f32 %v240, %v241
    %v243 = vadd.f32 %v242, 1e-05
    %v244 = vrsqrt.pop %v243
    %v245 = vmul.f32 %v244, %v243
    %v246 = vmul.f32 %v245, %v244
    %v247 = vmul.f32 0.5, %v246
    %v248 = vsub.f32 1.5, %v247
    %v249 = vmul.f32 %v244, %v248
    %vm250 = vweird.f32 %v243
    %vm251 = vweird.f32 %v244
    %vm252 = vmor %vm250, %vm251
    %v253 = vsel %vm252, %v244, %v249
    %v254 = vsub.f32 %v233, %v236
    %v255 = vmul.f32 %v254, %v253
    %v256 = vperm.slane %v141, 0
    %v257 = vmul.f32 %v255, %v256
    %v258 = vperm.slane %v142, 0
    %v259 = vadd.f32 %v257, %v258
    %v260 = vld [vmem:[#allocation4 + $0x190] sm:$0xff]
    %v261 = vld [vmem:[#allocation4 + $0x198] sm:$0xff]
    %v262 = vld [vmem:[#allocation4 + $0x1a0] sm:$0xff]
    %v263 = vld [vmem:[#allocation4 + $0x1a8] sm:$0xff]
    %v264 = vld [vmem:[#allocation4 + $0x1b0] sm:$0xff]
    %v265 = vld [vmem:[#allocation4 + $0x1b8] sm:$0xff]
    %v266 = vld [vmem:[#allocation4 + $0x1c0] sm:$0xff]
    %v267 = vld [vmem:[#allocation4 + $0x1c8] sm:$0xff]
    %v268 = vld [vmem:[#allocation4 + $0x1d0] sm:$0xff]
    %v269 = vld [vmem:[#allocation4 + $0x1d8] sm:$0xff]
    %v270 = vld [vmem:[#allocation4 + $0x1e0] sm:$0xff]
    %v271 = vld [vmem:[#allocation4 + $0x1e8] sm:$0xff]
    %v272 = vld [vmem:[#allocation4 + $0x1f0] sm:$0xff]
    %v273 = vld [vmem:[#allocation4 + $0x1f8] sm:$0xff]
    %v274 = vld [vmem:[#allocation4 + $0x200] sm:$0xff]
    %v275 = vld [vmem:[#allocation4 + $0x208] sm:$0xff]
    %v276 = vld [vmem:[#allocation4 + $0x210] sm:$0xff]
    %v277 = vld [vmem:[#allocation4 + $0x218] sm:$0xff]
    %v278 = vld [vmem:[#allocation4 + $0x220] sm:$0xff]
    %v279 = vld [vmem:[#allocation4 + $0x228] sm:$0xff]
    %v280 = vld [vmem:[#allocation4 + $0x230] sm:$0xff]
    %v281 = vld [vmem:[#allocation4 + $0x238] sm:$0xff]
    %v282 = vld [vmem:[#allocation4 + $0x240] sm:$0xff]
    %v283 = vld [vmem:[#allocation4 + $0x248] sm:$0xff]
    %v284 = vld [vmem:[#allocation4 + $0x250] sm:$0xff]
    %v285 = vld [vmem:[#allocation4 + $0x258] sm:$0xff]
    %v286 = vld [vmem:[#allocation4 + $0x260] sm:$0xff]
    %v287 = vld [vmem:[#allocation4 + $0x268] sm:$0xff]
    %v288 = vld [vmem:[#allocation4 + $0x270] sm:$0xff]
    %v289 = vld [vmem:[#allocation4 + $0x278] sm:$0xff]
    %v290 = vld [vmem:[#allocation4 + $0x280] sm:$0xff]
    %v291 = vld [vmem:[#allocation4 + $0x288] sm:$0xff]
    %v292 = vld [vmem:[#allocation4 + $0x290] sm:$0xff]
    %v293 = vld [vmem:[#allocation4 + $0x298] sm:$0xff]
    %v294 = vld [vmem:[#allocation4 + $0x2a0] sm:$0xff]
    %v295 = vld [vmem:[#allocation4 + $0x2a8] sm:$0xff]
    %v296 = vld [vmem:[#allocation4 + $0x2b0] sm:$0xff]
    %v297 = vld [vmem:[#allocation4 + $0x2b8] sm:$0xff]
    %v298 = vld [vmem:[#allocation4 + $0x2c0] sm:$0xff]
    %v299 = vld [vmem:[#allocation4 + $0x2c8] sm:$0xff]
    %v300 = vld [vmem:[#allocation4 + $0x2d0] sm:$0xff]
    %v301 = vld [vmem:[#allocation4 + $0x2d8] sm:$0xff]
    %v302 = vld [vmem:[#allocation4 + $0x2e0] sm:$0xff]
    %v303 = vld [vmem:[#allocation4 + $0x2e8] sm:$0xff]
    %v304 = vld [vmem:[#allocation4 + $0x2f0] sm:$0xff]
    %v305 = vld [vmem:[#allocation4 + $0x2f8] sm:$0xff]
    %v306 = vld [vmem:[#allocation4 + $0x300] sm:$0xff]
    %v307 = vld [vmem:[#allocation4 + $0x308] sm:$0xff]
    %v308 = vld [vmem:[#allocation6 + $0x8] sm:$0x1]
    %v309 = vld [vmem:[#allocation6 + $0x9] sm:$0x1]
    %v310 = vld [vmem:[#allocation6 + $0xa] sm:$0x1]
    %v311 = vld [vmem:[#allocation6 + $0xb] sm:$0x1]
    %v312 = vld [vmem:[#allocation6 + $0xc] sm:$0x1]
    %v313 = vld [vmem:[#allocation6 + $0xd] sm:$0x1]
    %v314 = vld [vmem:[#allocation6 + $0xe] sm:$0x1]
    %v315 = vperm.slane %v308, 0
    %316 = vmatpush.msra.mxu0 %v275
    %317 = vmatpush.msra.mxu0 %v274
    %318 = vmatpush.msra.mxu0 %v273
    %319 = vmatpush.msra.mxu0 %v272
    %320 = vmatpush.msra.mxu0 %v271
    %321 = vmatpush.msra.mxu0 %v270
    %322 = vmatpush.msra.mxu0 %v269
    %323 = vmatpush.msra.mxu0 %v268
    %324 = vmatpush.msra.mxu0 %v267
    %325 = vmatpush.msra.mxu0 %v266
    %326 = vmatpush.msra.mxu0 %v265
    %327 = vmatpush.msra.mxu0 %v264
    %328 = vmatpush.msra.mxu0 %v263
    %329 = vmatpush.msra.mxu0 %v262
    %330 = vmatpush.msra.mxu0 %v261
    %331 = vmatpush.msra.mxu0 %v260
    %332 = vmatmul.f32.gmra.mxu0 %v259
    %v333 = vpop.f32.mrf.mxu0
    %v334 = vadd.f32 %v315, %v333
    %335 = vdwg.mxu0
    %336 = vadd.xlane.f32.xlu0 %v334
    %v337 = vpop.xlane.xlu0 %336
    %v338 = vmul.f32 %v337, 0.03125
    %v339 = vmul.f32 %v334, %v334
    %340 = vadd.xlane.f32.xlu0 %v339
    %v341 = vpop.xlane.xlu0 %340
    %v342 = vmul.f32 %v341, 0.03125
    %v343 = vmul.f32 %v338, %v338
    %v344 = vsub.f32 %v342, %v343
    %v345 = vadd.f32 %v344, 1e-05
    %v346 = vrsqrt.pop %v345
    %v347 = vmul.f32 %v346, %v345
    %v348 = vmul.f32 %v347, %v346
    %v349 = vmul.f32 0.5, %v348
    %v350 = vsub.f32 1.5, %v349
    %v351 = vmul.f32 %v346, %v350
    %vm352 = vweird.f32 %v345
    %vm353 = vweird.f32 %v346
    %vm354 = vmor %vm352, %vm353
    %v355 = vsel %vm354, %v346, %v351
    %v356 = vsub.f32 %v334, %v338
    %v357 = vmul.f32 %v356, %v355
    %v358 = vperm.slane %v309, 0
    %v359 = vmul.f32 %v357, %v358
    %v360 = vperm.slane %v310, 0
    %v361 = vadd.f32 %v359, %v360
    %v362 = vperm.slane %v311, 0
    %363 = vmatpush.msra.mxu0 %v291
    %364 = vmatpush.msra.mxu0 %v290
    %365 = vmatpush.msra.mxu0 %v289
    %366 = vmatpush.msra.mxu0 %v288
    %367 = vmatpush.msra.mxu0 %v287
    %368 = vmatpush.msra.mxu0 %v286
    %369 = vmatpush.msra.mxu0 %v285
    %370 = vmatpush.msra.mxu0 %v284
    %371 = vmatpush.msra.mxu0 %v283
    %372 = vmatpush.msra.mxu0 %v282
    %373 = vmatpush.msra.mxu0 %v281
    %374 = vmatpush.msra.mxu0 %v280
    %375 = vmatpush.msra.mxu0 %v279
    %376 = vmatpush.msra.mxu0 %v278
    %377 = vmatpush.msra.mxu0 %v277
    %378 = vmatpush.msra.mxu0 %v276
    %379 = vmatmul.f32.gmra.mxu0 %v361
    %v380 = vpop.f32.mrf.mxu0
    %v381 = vadd.f32 %v362, %v380
    %382 = vdwg.mxu0
    %v383 = vmax.f32 %v381, 0.0
    %v384 = vperm.slane %v312, 0
    %385 = vmatpush.msra.mxu0 %v307
    %386 = vmatpush.msra.mxu0 %v306
    %387 = vmatpush.msra.mxu0 %v305
    %388 = vmatpush.msra.mxu0 %v304
    %389 = vmatpush.msra.mxu0 %v303
    %390 = vmatpush.msra.mxu0 %v302
    %391 = vmatpush.msra.mxu0 %v301
    %392 = vmatpush.msra.mxu0 %v300
    %393 = vmatpush.msra.mxu0 %v299
    %394 = vmatpush.msra.mxu0 %v298
    %395 = vmatpush.msra.mxu0 %v297
    %396 = vmatpush.msra.mxu0 %v296
    %397 = vmatpush.msra.mxu0 %v295
    %398 = vmatpush.msra.mxu0 %v294
    %399 = vmatpush.msra.mxu0 %v293
    %400 = vmatpush.msra.mxu0 %v292
    %401 = vmatmul.f32.gmra.mxu0 %v383
    %v402 = vpop.f32.mrf.mxu0
    %v403 = vadd.f32 %v384, %v402
    %404 = vdwg.mxu0
    %v405 = vadd.f32 %v361, %v403
    %406 = vadd.xlane.f32.xlu0 %v405
    %v407 = vpop.xlane.xlu0 %406
    %v408 = vmul.f32 %v407, 0.03125
    %v409 = vmul.f32 %v405, %v405
    %410 = vadd.xlane.f32.xlu0 %v409
    %v411 = vpop.xlane.xlu0 %410
    %v412 = vmul.f32 %v411, 0.03125
    %v413 = vmul.f32 %v408, %v408
    %v414 = vsub.f32 %v412, %v413
    %v415 = vadd.f32 %v414, 1e-05
    %v416 = vrsqrt.pop %v415
    %v417 = vmul.f32 %v416, %v415
    %v418 = vmul.f32 %v417, %v416
    %v419 = vmul.f32 0.5, %v418
    %v420 = vsub.f32 1.5, %v419
    %v421 = vmul.f32 %v416, %v420
    %vm422 = vweird.f32 %v415
    %vm423 = vweird.f32 %v416
    %vm424 = vmor %vm422, %vm423
    %v425 = vsel %vm424, %v416, %v421
    %v426 = vsub.f32 %v405, %v408
    %v427 = vmul.f32 %v426, %v425
    %v428 = vperm.slane %v313, 0
    %v429 = vmul.f32 %v427, %v428
    %v430 = vperm.slane %v314, 0
    %v431 = vadd.f32 %v429, %v430
    %v432 = vld [vmem:[#allocation4 + $0x310] sm:$0xff]
    %v433 = vld [vmem:[#allocation4 + $0x318] sm:$0xff]
    %v434 = vld [vmem:[#allocation4 + $0x320] sm:$0xff]
    %v435 = vld [vmem:[#allocation4 + $0x328] sm:$0xff]
    %v436 = vld [vmem:[#allocation4 + $0x330] sm:$0xff]
    %v437 = vld [vmem:[#allocation4 + $0x338] sm:$0xff]
    %v438 = vld [vmem:[#allocation4 + $0x340] sm:$0xff]
    %v439 = vld [vmem:[#allocation4 + $0x348] sm:$0xff]
    %v440 = vld [vmem:[#allocation4 + $0x350] sm:$0xff]
    %v441 = vld [vmem:[#allocation4 + $0x358] sm:$0xff]
    %v442 = vld [vmem:[#allocation4 + $0x360] sm:$0xff]
    %v443 = vld [vmem:[#allocation4 + $0x368] sm:$0xff]
    %v444 = vld [vmem:[#allocation4 + $0x370] sm:$0xff]
    %v445 = vld [vmem:[#allocation4 + $0x378] sm:$0xff]
    %v446 = vld [vmem:[#allocation4 + $0x380] sm:$0xff]
    %v447 = vld [vmem:[#allocation4 + $0x388] sm:$0xff]
    %v448 = vld [vmem:[#allocation6 + $0xf] sm:$0x1]
    %v449 = vperm.slane %v448, 0
    %450 = vmatpush.msra.mxu0 %v447
    %451 = vmatpush.msra.mxu0 %v446
    %452 = vmatpush.msra.mxu0 %v445
    %453 = vmatpush.msra.mxu0 %v444
    %454 = vmatpush.msra.mxu0 %v443
    %455 = vmatpush.msra.mxu0 %v442
    %456 = vmatpush.msra.mxu0 %v441
    %457 = vmatpush.msra.mxu0 %v440
    %458 = vmatpush.msra.mxu0 %v439
    %459 = vmatpush.msra.mxu0 %v438
    %460 = vmatpush.msra.mxu0 %v437
    %461 = vmatpush.msra.mxu0 %v436
    %462 = vmatpush.msra.mxu0 %v435
    %463 = vmatpush.msra.mxu0 %v434
    %464 = vmatpush.msra.mxu0 %v433
    %465 = vmatpush.msra.mxu0 %v432
    %466 = vmatmul.f32.gmra.mxu0 %v431
    %v467 = vpop.f32.mrf.mxu0
    %v468 = vadd.f32 %v449, %v467
    %469 = vdwg.mxu0
    %470 = vst [vmem:[%s3] sm:$0xff] %v468
    // Predicated region
    $region26: #{emotion_transformer_forward.1} parent=1 // pred_check
      _
    $region27: #{emotion_transformer_forward.1} parent=1 // pred_check_branch
      %472 = sbr.rel (0) target = $region29
    $region28: #{emotion_transformer_forward.1} parent=1 // pred_region
      _
    $region29: #{emotion_transformer_forward.1} parent=1 // pred_fallthru
      _
    // Predicated region
    $region30: #{emotion_transformer_forward.1} parent=1 // pred_check
      _
    $region31: #{emotion_transformer_forward.1} parent=1 // pred_check_branch
      %474 = sbr.rel (0) target = $region33
    $region32: #{emotion_transformer_forward.1} parent=1 // pred_region
      _
    $region33: #{emotion_transformer_forward.1} parent=1 // pred_fallthru
      _
    %475 = vsyncpa [#allocation3], 1
    %476 = vsyncpa [#allocation5], 1

</llo_original>
